<compile_context>
chip_gen: v7x
topology: tpu7x:2x2x1
jax: 0.10.0
libtpu: 0.0.40
codegen_flags: <defaults>
</compile_context>

<pallas_src>
import functools

import jax
import jax.numpy as jnp
from jax.experimental import pallas as pl
from jax.experimental.pallas import tpu as pltpu

IN_FEATURES = 4
HIDDEN = 128
CHUNK = 128          # in-kernel batch chunk: h chunk = (128,128) f32 = 16 vregs
MAX_TILE_B = 1024    # single-grid-step cap; larger batches tile in parallel


def _critic_kernel(x_ref, w1_ref, b1_ref, w2_ref, b2_ref, out_ref, *, tb):
    # x_ref : (tb, 4)    state tile, native layout (batch on sublanes)
    # w1_ref: (4, 128)   fc_1.weight^T      (resident in VMEM)
    # b1_ref: (1, 128)   fc_1.bias row      (resident)
    # w2_ref: (1, 128)   value_layer.weight (resident)
    # b2_ref: (1,)       value_layer.bias, scalar in SMEM
    # out_ref: (tb, 1)   value per example
    w1 = w1_ref[...]
    b1 = b1_ref[...]
    w2 = w2_ref[...]
    b2 = b2_ref[0]

    def do_chunk(start, rows):
        xc = x_ref[pl.ds(start, rows), :]                           # (rows, 4)
        h = jnp.dot(xc, w1, preferred_element_type=jnp.float32)     # (rows, 128) MXU
        h = jnp.maximum(h + b1, 0.0)                                # bias + ReLU (VPU)
        # Layer 2 as multiply + lane reduction (VPU + XLU); an MXU matmul here
        # would use 1 of 128/256 output columns (N=1), so keep it off the MXU.
        v = jnp.sum(h * w2, axis=-1, keepdims=True) + b2            # (rows, 1)
        out_ref[pl.ds(start, rows), :] = v.astype(out_ref.dtype)

    n_full = tb // CHUNK
    rem = tb - n_full * CHUNK
    if n_full > 0:
        @pl.loop(0, n_full)
        def _(c):
            do_chunk(pl.multiple_of(c * CHUNK, CHUNK), CHUNK)
    if rem > 0:
        do_chunk(n_full * CHUNK, rem)     # static tail (tb is a static Python int)


def critic_forward(state, w1, b1, w2, b2, *, max_tile_b=MAX_TILE_B):
    """state: (B, 4); w1: (128, 4); b1: (128,); w2: (1, 128); b2: (1,)."""
    B = state.shape[0]
    x = state.astype(jnp.float32)

    # Sublane granularity only: pad the batch to a multiple of 8 rows, and only
    # when actually needed (no pass over the data when B % 8 == 0, never a transpose).
    b_pad = ((B + 7) // 8) * 8
    if b_pad != B:
        x = jnp.pad(x, ((0, b_pad - B), (0, 0)))

    # One grid step for typical batches; clamp/round any user tile size to a
    # multiple of 128 so the BlockSpec always satisfies Mosaic's layout rules.
    max_tile = max(CHUNK, (int(max_tile_b) // CHUNK) * CHUNK)
    tb = b_pad if b_pad <= max_tile else max_tile
    num_tiles = pl.cdiv(b_pad, tb)

    # Tiny one-time weight prep (a few KB total).
    w1_t = w1.astype(jnp.float32).T.reshape(IN_FEATURES, HIDDEN)    # (4, 128)
    b1_row = b1.astype(jnp.float32).reshape(1, HIDDEN)
    w2_row = w2.astype(jnp.float32).reshape(1, HIDDEN)
    b2_s = b2.astype(jnp.float32).reshape(1)

    cost = pl.CostEstimate(
        flops=2 * b_pad * IN_FEATURES * HIDDEN + 2 * b_pad * HIDDEN,
        transcendentals=0,
        bytes_accessed=4 * (x.size + b_pad + w1_t.size + b1_row.size
                            + w2_row.size + 1),
    )

    out = pl.pallas_call(
        functools.partial(_critic_kernel, tb=tb),
        out_shape=jax.ShapeDtypeStruct((b_pad, 1), jnp.float32),
        grid_spec=pl.GridSpec(
            grid=(num_tiles,),
            in_specs=[
                pl.BlockSpec((tb, IN_FEATURES), lambda i: (i, 0)),      # state tile
                pl.BlockSpec((IN_FEATURES, HIDDEN), lambda i: (0, 0)),  # w1^T (resident)
                pl.BlockSpec((1, HIDDEN), lambda i: (0, 0)),            # b1 (resident)
                pl.BlockSpec((1, HIDDEN), lambda i: (0, 0)),            # w2 (resident)
                pl.BlockSpec(memory_space=pltpu.MemorySpace.SMEM),      # b2 scalar
            ],
            out_specs=pl.BlockSpec((tb, 1), lambda i: (i, 0)),
        ),
        compiler_params=pltpu.CompilerParams(
            dimension_semantics=("parallel",)),
        cost_estimate=cost,
    )(x, w1_t, b1_row, w2_row, b2_s)

    return out[:B]


def make_params(key):
    # fc_1: PyTorch default-style uniform init (bound = 1/sqrt(fan_in)).
    # value_layer: explicitly zero per the module definition.
    k1, k2 = jax.random.split(key)
    bound = 1.0 / float(jnp.sqrt(jnp.float32(IN_FEATURES)))
    w1 = jax.random.uniform(k1, (HIDDEN, IN_FEATURES), jnp.float32, -bound, bound)
    b1 = jax.random.uniform(k2, (HIDDEN,), jnp.float32, -bound, bound)
    w2 = jnp.zeros((1, HIDDEN), jnp.float32)   # value_layer.weight = zeros(1, 128)
    b2 = jnp.zeros((1,), jnp.float32)          # value_layer.bias   = zeros(1)
    return w1, b1, w2, b2


def reference_forward(state, w1, b1, w2, b2):
    h = jnp.maximum(state @ w1.T + b1, 0.0)
    return h @ w2.T + b2


if __name__ == "__main__":
    key = jax.random.PRNGKey(0)
    k_state, k_params, k_w2, k_b2, k_big, k_mid = jax.random.split(key, 6)

    # --- small batch, module-faithful params (zero value layer -> zeros) ----
    B = 8
    state = jax.random.normal(k_state, (B, IN_FEATURES), jnp.float32)
    w1, b1, w2_zero, b2_zero = make_params(k_params)
    out_zero = jax.block_until_ready(critic_forward(state, w1, b1, w2_zero, b2_zero))
    ref_zero = reference_forward(state, w1, b1, w2_zero, b2_zero)
    assert out_zero.shape == (B, 1)
    assert jnp.allclose(out_zero, ref_zero, atol=1e-5, rtol=1e-5)

    # --- nonzero value layer so both layers are actually exercised ----------
    w2 = jax.random.normal(k_w2, (1, HIDDEN), jnp.float32) * 0.1
    b2 = jax.random.normal(k_b2, (1,), jnp.float32)
    out = jax.block_until_ready(critic_forward(state, w1, b1, w2, b2))
    ref = reference_forward(state, w1, b1, w2, b2)
    assert out.shape == (B, 1)
    assert jnp.allclose(out, ref, atol=1e-4, rtol=1e-5)

    # --- non-multiple-of-8 batch: ragged pad path, still a single grid step -
    B_big = 700
    state_big = jax.random.normal(k_big, (B_big, IN_FEATURES), jnp.float32)
    out_big = jax.block_until_ready(critic_forward(state_big, w1, b1, w2, b2))
    ref_big = reference_forward(state_big, w1, b1, w2, b2)
    assert out_big.shape == (B_big, 1)
    assert jnp.allclose(out_big, ref_big, atol=1e-4, rtol=1e-5)

    # --- multi-tile grid path (2 parallel 256-row tiles) ---------------------
    B_mid = 512
    state_mid = jax.random.normal(k_mid, (B_mid, IN_FEATURES), jnp.float32)
    out_mid = jax.block_until_ready(
        critic_forward(state_mid, w1, b1, w2, b2, max_tile_b=256))
    ref_mid = reference_forward(state_mid, w1, b1, w2, b2)
    assert out_mid.shape == (B_mid, 1)
    assert jnp.allclose(out_mid, ref_mid, atol=1e-4, rtol=1e-5)

    print("KERNEL_OK")
</pallas_src>

<mosaic_0001>
module attributes {stable_mosaic.version = 11 : i64} {
  func.func @_critic_kernel(%arg0: i32, %arg1: memref<8x4xf32, #tpu.memory_space<vmem>>, %arg2: memref<4x128xf32, #tpu.memory_space<vmem>>, %arg3: memref<1x128xf32, #tpu.memory_space<vmem>>, %arg4: memref<1x128xf32, #tpu.memory_space<vmem>>, %arg5: memref<1xf32, #tpu.memory_space<smem>>, %arg6: memref<8x1xf32, #tpu.memory_space<vmem>>) attributes {dimension_semantics = [#tpu.dimension_semantics<parallel>], iteration_bounds = array<i64: 1>, scalar_prefetch = 0 : i64, scratch_operands = 0 : i64, tpu.core_type = #tpu.core_type<tc>, window_params = [{transform_indices = @transform_0, window_bounds = array<i64: 8, 4>}, {pipeline_mode = #tpu.pipeline_mode<synchronous>, transform_indices = @transform_1, window_bounds = array<i64: 4, 128>}, {pipeline_mode = #tpu.pipeline_mode<synchronous>, transform_indices = @transform_2, window_bounds = array<i64: 1, 128>}, {pipeline_mode = #tpu.pipeline_mode<synchronous>, transform_indices = @transform_3, window_bounds = array<i64: 1, 128>}, {transform_indices = @transform_4, window_bounds = array<i64: 1>}, {transform_indices = @transform_5, window_bounds = array<i64: 8, 1>}]} {
    %c0 = arith.constant 0 : index
    %c0_0 = arith.constant 0 : index
    %0 = vector.load %arg2[%c0, %c0_0] : memref<4x128xf32, #tpu.memory_space<vmem>>, vector<4x128xf32>
    %c0_1 = arith.constant 0 : index
    %c0_2 = arith.constant 0 : index
    %1 = vector.load %arg3[%c0_1, %c0_2] : memref<1x128xf32, #tpu.memory_space<vmem>>, vector<1x128xf32>
    %c0_3 = arith.constant 0 : index
    %c0_4 = arith.constant 0 : index
    %2 = vector.load %arg4[%c0_3, %c0_4] : memref<1x128xf32, #tpu.memory_space<vmem>>, vector<1x128xf32>
    %c0_5 = arith.constant 0 : index
    %3 = memref.load %arg5[%c0_5] : memref<1xf32, #tpu.memory_space<smem>>
    %c0_6 = arith.constant 0 : index
    %c0_7 = arith.constant 0 : index
    %4 = vector.load %arg1[%c0_6, %c0_7] : memref<8x4xf32, #tpu.memory_space<vmem>>, vector<8x4xf32>
    %cst = arith.constant dense<0.000000e+00> : vector<8x128xf32>
    %5 = tpu.matmul %4, %0, %cst {dimension_numbers = #tpu.dot_dimension_numbers<[1], [0], [0], [1], [0, 0, 1, 1], [], []>} : vector<8x4xf32>, vector<4x128xf32>, vector<8x128xf32> -> vector<8x128xf32>
    %6 = vector.broadcast %1 : vector<1x128xf32> to vector<8x128xf32>
    %7 = arith.addf %5, %6 : vector<8x128xf32>
    %cst_8 = arith.constant 0.000000e+00 : f32
    %8 = vector.broadcast %cst_8 : f32 to vector<8x128xf32>
    %9 = arith.maximumf %7, %8 : vector<8x128xf32>
    %10 = vector.broadcast %2 : vector<1x128xf32> to vector<8x128xf32>
    %11 = arith.mulf %9, %10 : vector<8x128xf32>
    %cst_9 = arith.constant dense<0.000000e+00> : vector<8xf32>
    %12 = vector.multi_reduction <add>, %11, %cst_9 [1] : vector<8x128xf32> to vector<8xf32>
    %13 = vector.shape_cast %12 : vector<8xf32> to vector<8x1xf32>
    %14 = vector.broadcast %3 : f32 to vector<8x1xf32>
    %15 = arith.addf %13, %14 : vector<8x1xf32>
    %c0_10 = arith.constant 0 : index
    %c0_11 = arith.constant 0 : index
    %16 = vector.load %arg6[%c0_10, %c0_11] : memref<8x1xf32, #tpu.memory_space<vmem>>, vector<8x1xf32>
    tpu.vector_store %arg6[%c0_10, %c0_11], %15 {strides = array<i32>} : memref<8x1xf32, #tpu.memory_space<vmem>>, vector<8x1xf32>,
    return
  }
  func.func @transform_0(%arg0: i32) -> (i32, i32) {
    %c0_i32 = arith.constant 0 : i32
    %c0_i32_0 = arith.constant 0 : i32
    return %arg0, %c0_i32 : i32, i32
  }
  func.func @transform_1(%arg0: i32) -> (i32, i32) {
    %c0_i32 = arith.constant 0 : i32
    %c0_i32_0 = arith.constant 0 : i32
    %c0_i32_1 = arith.constant 0 : i32
    return %c0_i32, %c0_i32_0 : i32, i32
  }
  func.func @transform_2(%arg0: i32) -> (i32, i32) {
    %c0_i32 = arith.constant 0 : i32
    %c0_i32_0 = arith.constant 0 : i32
    %c0_i32_1 = arith.constant 0 : i32
    return %c0_i32, %c0_i32_0 : i32, i32
  }
  func.func @transform_3(%arg0: i32) -> (i32, i32) {
    %c0_i32 = arith.constant 0 : i32
    %c0_i32_0 = arith.constant 0 : i32
    %c0_i32_1 = arith.constant 0 : i32
    return %c0_i32, %c0_i32_0 : i32, i32
  }
  func.func @transform_4(%arg0: i32) -> i32 {
    %c0_i32 = arith.constant 0 : i32
    %c0_i32_0 = arith.constant 0 : i32
    return %c0_i32 : i32
  }
  func.func @transform_5(%arg0: i32) -> (i32, i32) {
    %c0_i32 = arith.constant 0 : i32
    %c0_i32_0 = arith.constant 0 : i32
    return %arg0, %c0_i32 : i32, i32
  }
}

</mosaic_0001>

<llo_original>
// kernel: tpu_custom_call.1
$region0: #{tpu_custom_call.1}
  #allocation0 [shape = 'u32[]', space=smem, size = 0x4, offset = 0x4, fixed_abs, tag = 'smem constant byte address 0x4 - core index']
  #allocation1 [shape = 'u32[144,128]{1,0:T(1,128)}', space=vmem, size = 0x12000, scoped, tag = 'internal scratch']
  #allocation2 [shape = 'f32[1]{0:T(128)S(6)}', space=smem, size = 0x200, scoped, tag = 'scoped memory for tpu_custom_call.1']
  %s0 = inlined_call_operand.vmem [shape: f32[8,4], index: 0, kind: input, shape index: {}]
  %s1 = inlined_call_operand.vmem [shape: f32[4,128], index: 1, kind: input, shape index: {}]
  %s2 = inlined_call_operand.vmem [shape: f32[1,128], index: 2, kind: input, shape index: {}]
  %s3 = inlined_call_operand.vmem [shape: f32[1,128], index: 3, kind: input, shape index: {}]
  %s4 = inlined_call_operand.<no memory space> [shape: f32[1], index: 4, kind: input, shape index: {}]
  %s5 = inlined_call_operand.vmem [shape: f32[8,1], index: 5, kind: output, shape index: {}]
  %s6 = sld [smem:[#allocation0]]
  $region30: #{tpu_custom_call.1} parent=0
    _
  %s8 = ssub.s32 1, %s6
  %s9 = scalar_select 0, %s8, %s6
  %10 = sst [smem:[#allocation2]] %s4
  // Predicated region
  $region2: #{tpu_custom_call.1} parent=0 // pred_check
    _
  $region3: #{tpu_custom_call.1} parent=0 // pred_check_branch
    %12 = sbr.rel (0) target = $region5
  $region4: #{tpu_custom_call.1} parent=0 // pred_region
    _
  $region5: #{tpu_custom_call.1} parent=0 // pred_fallthru
    _
  // Predicated region
  $region6: #{tpu_custom_call.1} parent=0 // pred_check
    _
  $region7: #{tpu_custom_call.1} parent=0 // pred_check_branch
    %14 = sbr.rel (0) target = $region9
  $region8: #{tpu_custom_call.1} parent=0 // pred_region
    _
  $region9: #{tpu_custom_call.1} parent=0 // pred_fallthru
    _
  // Predicated region
  $region10: #{tpu_custom_call.1} parent=0 // pred_check
    _
  $region11: #{tpu_custom_call.1} parent=0 // pred_check_branch
    %16 = sbr.rel (0) target = $region13
  $region12: #{tpu_custom_call.1} parent=0 // pred_region
    _
  $region13: #{tpu_custom_call.1} parent=0 // pred_fallthru
    _
  // Predicated region
  $region14: #{tpu_custom_call.1} parent=0 // pred_check
    _
  $region15: #{tpu_custom_call.1} parent=0 // pred_check_branch
    %18 = sbr.rel (0) target = $region17
  $region16: #{tpu_custom_call.1} parent=0 // pred_region
    _
  $region17: #{tpu_custom_call.1} parent=0 // pred_fallthru
    _
  // Predicated region
  $region18: #{tpu_custom_call.1} parent=0 // pred_check
    _
  $region19: #{tpu_custom_call.1} parent=0 // pred_check_branch
    %20 = sbr.rel (0) target = $region21
  $region20: #{tpu_custom_call.1} parent=0 // pred_region
    _
  $region21: #{tpu_custom_call.1} parent=0 // pred_fallthru
    _
  %v21 = vld [vmem:[%s1] sm:$0xf]
  %v22 = vld [vmem:[%s2] sm:$0x1]
  %v23 = vld [vmem:[%s3] sm:$0x1]
  %s24 = sld [smem:[#allocation2]]
  %v25 = vld [vmem:[%s0] sm:$0xff]
  %v27 = vlaneseq
  %v28 = vshrl.u32 %v27, 7
  %v29 = vsub.s32 0, %v28
  %v30 = vrot.slane %v22, %v29
  %vm32 = vcmask 31744
  %v34 = vsel %vm32, %v25, 0
  %vm36 = vcmask 1043456
  %v38 = vsel %vm36, %v21, 0
  %40 = vmatprep.subr.mxu0 0.0
  %41 = vmatpush1.msra.mxu0 %v38
  %42 = vmatprep.subr.mxu0 0.0
  %43 = vmatpush1.msra.mxu0 0.0
  %44 = vmatprep.subr.mxu0 0.0
  %45 = vmatpush1.msra.mxu0 0.0
  %46 = vmatprep.subr.mxu0 0.0
  %47 = vmatpush1.msra.mxu0 0.0
  %48 = vmatprep.subr.mxu0 0.0
  %49 = vmatpush1.msra.mxu0 0.0
  %50 = vmatprep.subr.mxu0 0.0
  %51 = vmatpush1.msra.mxu0 0.0
  %52 = vmatprep.subr.mxu0 0.0
  %53 = vmatpush1.msra.mxu0 0.0
  %54 = vmatprep.subr.mxu0 0.0
  %55 = vmatpush1.msra.mxu0 0.0
  %56 = vmatprep.subr.mxu0 0.0
  %57 = vmatpush1.msra.mxu0 0.0
  %58 = vmatprep.subr.mxu0 0.0
  %59 = vmatpush1.msra.mxu0 0.0
  %60 = vmatprep.subr.mxu0 0.0
  %61 = vmatpush1.msra.mxu0 0.0
  %62 = vmatprep.subr.mxu0 0.0
  %63 = vmatpush1.msra.mxu0 0.0
  %64 = vmatprep.subr.mxu0 0.0
  %65 = vmatpush1.msra.mxu0 0.0
  %66 = vmatprep.subr.mxu0 0.0
  %67 = vmatpush1.msra.mxu0 0.0
  %68 = vmatprep.subr.mxu0 0.0
  %69 = vmatpush1.msra.mxu0 0.0
  %70 = vmatprep.subr.mxu0 0.0
  %71 = vmatpush1.msra.mxu0 0.0
  %72 = vmatprep.subr.mxu0 0.0
  %73 = vmatpush1.msra.mxu0 0.0
  %74 = vmatprep.subr.mxu0 0.0
  %75 = vmatpush1.msra.mxu0 0.0
  %76 = vmatprep.subr.mxu0 0.0
  %77 = vmatpush1.msra.mxu0 0.0
  %78 = vmatprep.subr.mxu0 0.0
  %79 = vmatpush1.msra.mxu0 0.0
  %80 = vmatprep.subr.mxu0 0.0
  %81 = vmatpush1.msra.mxu0 0.0
  %82 = vmatprep.subr.mxu0 0.0
  %83 = vmatpush1.msra.mxu0 0.0
  %84 = vmatprep.subr.mxu0 0.0
  %85 = vmatpush1.msra.mxu0 0.0
  %86 = vmatprep.subr.mxu0 0.0
  %87 = vmatpush1.msra.mxu0 0.0
  %88 = vmatprep.subr.mxu0 0.0
  %89 = vmatpush1.msra.mxu0 0.0
  %90 = vmatprep.subr.mxu0 0.0
  %91 = vmatpush1.msra.mxu0 0.0
  %92 = vmatprep.subr.mxu0 0.0
  %93 = vmatpush1.msra.mxu0 0.0
  %94 = vmatprep.subr.mxu0 0.0
  %95 = vmatpush1.msra.mxu0 0.0
  %96 = vmatprep.subr.mxu0 0.0
  %97 = vmatpush1.msra.mxu0 0.0
  %98 = vmatprep.subr.mxu0 0.0
  %99 = vmatpush1.msra.mxu0 0.0
  %100 = vmatprep.subr.mxu0 0.0
  %101 = vmatpush1.msra.mxu0 0.0
  %102 = vmatprep.subr.mxu0 0.0
  %103 = vmatpush1.msra.mxu0 0.0
  %104 = vmatprep.mubr.f32.mxu0 0.0
  %105 = vmatmul.mubr.f32.gmra.mrb[0].mxu0 %v34
  %v106 = vpop.f32.mrb[0].mxu0
  %v107 = vadd.f32 %v30, %v106
  %v108 = vpop.f32.mrb[0].mxu0
  %109 = vdwg.mxu0
  %v110 = vmax.f32 %v107, 0.0
  %v112 = vlaneseq
  %v113 = vshrl.u32 %v112, 7
  %v114 = vsub.s32 0, %v113
  %v115 = vrot.slane %v23, %v114
  %v117 = vmul.f32 %v110, %v115
  %118 = vadd.xlane.f32.xlu0 %v117
  %v119 = vpop.xlane.xlu0 %118
  %v120 = vstv %s24
  %v121 = vadd.f32 %v119, %v120
  %vm122 = vcmask 7168
  %123 = vst.msk [vmem:[%s5] sm:$0xff] %vm122, %v121
  // Predicated region
  $region22: #{tpu_custom_call.1} parent=0 // pred_check
    _
  $region23: #{tpu_custom_call.1} parent=0 // pred_check_branch
    %125 = sbr.rel (0) target = $region25
  $region24: #{tpu_custom_call.1} parent=0 // pred_region
    _
  $region25: #{tpu_custom_call.1} parent=0 // pred_fallthru
    _
  // Predicated region
  $region26: #{tpu_custom_call.1} parent=0 // pred_check
    _
  $region27: #{tpu_custom_call.1} parent=0 // pred_check_branch
    %127 = sbr.rel (0) target = $region29
  $region28: #{tpu_custom_call.1} parent=0 // pred_region
    _
  $region29: #{tpu_custom_call.1} parent=0 // pred_fallthru
    _

</llo_original>
